<compile_context>
chip_gen: v5e
topology: v5e:2x2
jax: 0.10.0
libtpu: 0.0.40
codegen_flags: <defaults>
</compile_context>

<pallas_src>
import functools

import jax
import jax.numpy as jnp
from jax.experimental import pallas as pl
from jax.experimental.pallas import tpu as pltpu

KSIZE = 3          # kernel_size
PAD = 1            # padding
_LANE = 128
_MAX_TILE_N = 4096


def _round_up(x, m):
    return ((x + m - 1) // m) * m


def _vmem_limit_bytes():
    """Generation-aware scoped-VMEM request (~96 MiB v5e/v6e, ~48 MiB v7x)."""
    cap = 64 * 1024 * 1024
    try:
        info = pltpu.get_tpu_info()
        cap = int(getattr(info, "vmem_capacity_bytes", cap))
    except Exception:
        pass
    return min((cap * 3) // 4, 100 * 1024 * 1024)


def _pick_tile_n(n_flat, halo_pad, cp, k_pad, m_pad, batch, budget):
    """Largest TILE_N (multiple of HALO_PAD, hence of 128) fitting the budget."""
    n_need = _round_up(max(n_flat, halo_pad), halo_pad)

    def footprint(t):
        main = 2 * cp * t * 2              # bf16 main tile, double buffered
        halo = 2 * cp * halo_pad * 2       # bf16 halo tile, double buffered
        outb = 2 * m_pad * t * 4           # f32 output tile, double buffered
        wres = 2 * m_pad * k_pad * 2       # resident bf16 weight (counted 2x:
        bres = 2 * m_pad * 4               #   Pallas double-buffers it anyway)
        slab = k_pad * t * 4               # f32 patch-slab scratch
        vals = 2 * cp * (t + halo_pad) * 4  # live f32 values (ext + rolled)
        return main + halo + outb + wres + bres + slab + vals

    t_cap = max(halo_pad, min(_MAX_TILE_N, n_need))
    best = halo_pad
    t = halo_pad
    while t <= t_cap:
        if footprint(t) <= budget:
            best = t
        t += halo_pad

    # v7x megacore: if there is a single batch, keep >= 2 grid steps so both
    # TensorCores get work (neutral on single-core v5e/v6e).
    if batch == 1:
        if -(-n_need // best) < 2 and best > halo_pad:
            best = max(halo_pad, _round_up(n_need // 2, halo_pad))
    n_tiles = -(-n_need // best)
    return best, n_tiles


def _complex_conv_kernel(xm_ref, xh_ref, w_ref, b_ref, o_ref, slab_ref, *,
                         wp, cp, tile_n):
    """Build the patch slab from main+halo with static XLU rolls, then one
    fused bf16 MXU contraction with f32 accumulation.

    xm_ref : [CP, TILE_N]     bf16 flat input chunk (channel-stacked, width-padded)
    xh_ref : [CP, HALO_PAD]   bf16 right halo (start of the next chunk)
    w_ref  : [M_PAD, K_PAD]   bf16 fused complex weight (resident)
    b_ref  : [M_PAD, 1]       f32 fused bias (resident)
    o_ref  : [M_PAD, TILE_N]  f32 lane-dense output tile
    slab_ref:[K_PAD, TILE_N]  f32 scratch patch slab
    """
    ext = jnp.concatenate(
        [xm_ref[...].astype(jnp.float32), xh_ref[...].astype(jnp.float32)],
        axis=1)
    ext_len = ext.shape[1]
    for kh in range(KSIZE):
        for kw in range(KSIZE):
            tap = kh * KSIZE + kw
            d = kh * wp + kw                      # static flat tap offset
            if d == 0:
                shifted = ext
            else:
                # left-shift by d  ==  roll by (len - d):  shifted[j] = ext[j + d]
                shifted = pltpu.roll(ext, shift=ext_len - d, axis=1)
            slab_ref[tap * cp:(tap + 1) * cp, :] = shifted[:, :tile_n]
    o_ref[...] = (
        jnp.dot(w_ref[...], slab_ref[...].astype(jnp.bfloat16),
                preferred_element_type=jnp.float32)
        + b_ref[...])


def complex_conv2d(x, wr, br, wi, bi):
    """x: [B, Cin, H, W, 2]; wr/wi: [Cout, Cin, 3, 3]; br/bi: [Cout].

    Returns [B, Cout, H, W, 2] float32 (same convention as the PyTorch module).
    """
    B, C, H, W, _ = x.shape
    OC = wr.shape[0]
    Hp, Wp = H + 2 * PAD, W + 2 * PAD
    CP = _round_up(2 * C, 8)              # stacked (real|imag) channels, padded to 8
    K_PAD = KSIZE * KSIZE * CP            # fused contraction length
    M = 2 * OC                            # interleaved real/imag output rows
    M_PAD = _round_up(M, 8)
    N_FLAT = H * Wp                       # flat outputs incl. 2 junk cols per row
    HALO = 2 * Wp + 2                     # max flat tap offset (kh=kw=2)
    HALO_PAD = _round_up(HALO, _LANE)

    vmem_limit = _vmem_limit_bytes()
    tile_n, n_tiles = _pick_tile_n(N_FLAT, HALO_PAD, CP, K_PAD, M_PAD, B,
                                   budget=vmem_limit // 2)
    n_round = n_tiles * tile_n
    l_pad = (n_tiles + 1) * tile_n        # room for the last tile's halo block

    # ---- operand prep: cheap XLA passes over the *raw* input (no im2col) ----
    xc = jnp.concatenate([x[..., 0], x[..., 1]], axis=1)              # [B, 2C, H, W]
    xp = jnp.pad(xc, ((0, 0), (0, 0), (PAD, PAD), (PAD, PAD)))        # [B, 2C, Hp, Wp]
    xf = xp.reshape(B, 2 * C, Hp * Wp).astype(jnp.bfloat16)
    xf = jnp.pad(xf, ((0, 0), (0, CP - 2 * C), (0, l_pad - Hp * Wp)))  # [B, CP, L]

    # Fused complex weight: columns ordered (tap, [real Cin | imag Cin | pad]),
    # rows interleaved (2c = real_c, 2c+1 = imag_c) so the epilogue is a single
    # reshape + transpose.  real = Wr*x_r - Wi*x_i ; imag = Wi*x_r + Wr*x_i.
    wr_t = jnp.transpose(wr, (0, 2, 3, 1)).reshape(OC, KSIZE * KSIZE, C)
    wi_t = jnp.transpose(wi, (0, 2, 3, 1)).reshape(OC, KSIZE * KSIZE, C)

    def pack_rows(a, b):
        cols = jnp.concatenate([a, b], axis=-1)                       # [OC, 9, 2C]
        cols = jnp.pad(cols, ((0, 0), (0, 0), (0, CP - 2 * C)))
        return cols.reshape(OC, K_PAD)

    w_real_rows = pack_rows(wr_t, -wi_t)
    w_imag_rows = pack_rows(wi_t, wr_t)
    w_big = jnp.stack([w_real_rows, w_imag_rows], axis=1).reshape(M, K_PAD)
    w_big = jnp.pad(w_big, ((0, M_PAD - M), (0, 0))).astype(jnp.bfloat16)
    b_big = jnp.stack([br - bi, br + bi], axis=1).reshape(M)
    b_big = jnp.pad(b_big, (0, M_PAD - M)).astype(jnp.float32).reshape(M_PAD, 1)

    ratio = tile_n // HALO_PAD
    kernel = functools.partial(_complex_conv_kernel, wp=Wp, cp=CP, tile_n=tile_n)

    out = pl.pallas_call(
        kernel,
        out_shape=jax.ShapeDtypeStruct((B, M_PAD, n_round), jnp.float32),
        grid=(B, n_tiles),
        in_specs=[
            # streamed main chunk of the flat input
            pl.BlockSpec((None, CP, tile_n), lambda b, n: (b, 0, n)),
            # streamed halo = first HALO_PAD lanes of the *next* chunk
            pl.BlockSpec((None, CP, HALO_PAD),
                         lambda b, n: (b, 0, (n + 1) * ratio)),
            # resident fused weight / bias (constant index -> DMA'd once)
            pl.BlockSpec((M_PAD, K_PAD), lambda b, n: (0, 0)),
            pl.BlockSpec((M_PAD, 1), lambda b, n: (0, 0)),
        ],
        out_specs=pl.BlockSpec((None, M_PAD, tile_n), lambda b, n: (b, 0, n)),
        scratch_shapes=[pltpu.VMEM((K_PAD, tile_n), jnp.float32)],
        compiler_params=pltpu.CompilerParams(
            dimension_semantics=("parallel", "arbitrary"),
            vmem_limit_bytes=vmem_limit),
    )(xf, xf, w_big, b_big)

    # Epilogue: drop row/lane padding + junk width columns, one transpose.
    out = out[:, :M, :N_FLAT].reshape(B, OC, 2, H, Wp)[:, :, :, :, :W]
    return jnp.transpose(out, (0, 1, 3, 4, 2))                        # [B,OC,H,W,2]


def _reference(x, wr, br, wi, bi):
    """Pure-JAX reference using lax conv (NCHW), mirrors the torch forward."""
    def conv(inp, w, b):
        y = jax.lax.conv_general_dilated(
            inp, w, window_strides=(1, 1), padding=((PAD, PAD), (PAD, PAD)),
            dimension_numbers=("NCHW", "OIHW", "NCHW"))
        return y + b.reshape(1, -1, 1, 1)

    x_r, x_i = x[..., 0], x[..., 1]
    real = conv(x_r, wr, br) - conv(x_i, wi, bi)
    imag = conv(x_i, wr, br) + conv(x_r, wi, bi)
    return jnp.stack([real, imag], axis=-1)


if __name__ == "__main__":
    B, C_IN, C_OUT, H, W = 2, 4, 8, 16, 16

    key = jax.random.PRNGKey(0)
    k_x, k_wr, k_br, k_wi, k_bi = jax.random.split(key, 5)

    fan_in = C_IN * KSIZE * KSIZE
    bound = 1.0 / (fan_in ** 0.5)
    x = jax.random.normal(k_x, (B, C_IN, H, W, 2), jnp.float32)
    wr = jax.random.uniform(k_wr, (C_OUT, C_IN, KSIZE, KSIZE), jnp.float32,
                            -bound, bound)
    br = jax.random.uniform(k_br, (C_OUT,), jnp.float32, -bound, bound)
    wi = jax.random.uniform(k_wi, (C_OUT, C_IN, KSIZE, KSIZE), jnp.float32,
                            -bound, bound)
    bi = jax.random.uniform(k_bi, (C_OUT,), jnp.float32, -bound, bound)

    run = jax.jit(complex_conv2d)
    out = jax.block_until_ready(run(x, wr, br, wi, bi))
    ref = jax.block_until_ready(_reference(x, wr, br, wi, bi))

    assert out.shape == (B, C_OUT, H, W, 2), out.shape
    # bf16-streamed operands (f32 accumulation) -> relaxed tolerance vs f32 ref.
    max_err = float(jnp.max(jnp.abs(out - ref)))
    assert jnp.allclose(out, ref, atol=3e-2, rtol=3e-2), max_err
    print("KERNEL_OK")
</pallas_src>

<mosaic_0001>
module attributes {stable_mosaic.version = 11 : i64} {
  func.func @_complex_conv_kernel(%arg0: i32, %arg1: i32, %arg2: memref<1x8x384xbf16, #tpu.memory_space<vmem>>, %arg3: memref<1x8x128xbf16, #tpu.memory_space<vmem>>, %arg4: memref<16x72xbf16, #tpu.memory_space<vmem>>, %arg5: memref<16x1xf32, #tpu.memory_space<vmem>>, %arg6: memref<1x16x384xf32, #tpu.memory_space<vmem>>, %arg7: memref<72x384xf32, #tpu.memory_space<vmem>>) attributes {dimension_semantics = [#tpu.dimension_semantics<parallel>, #tpu.dimension_semantics<arbitrary>], iteration_bounds = array<i64: 2, 1>, scalar_prefetch = 0 : i64, scratch_operands = 1 : i64, tpu.core_type = #tpu.core_type<tc>, window_params = [{transform_indices = @transform_0, window_bounds = array<i64: 1, 8, 384>}, {transform_indices = @transform_1, window_bounds = array<i64: 1, 8, 128>}, {pipeline_mode = #tpu.pipeline_mode<synchronous>, transform_indices = @transform_2, window_bounds = array<i64: 16, 72>}, {pipeline_mode = #tpu.pipeline_mode<synchronous>, transform_indices = @transform_3, window_bounds = array<i64: 16, 1>}, {transform_indices = @transform_4, window_bounds = array<i64: 1, 16, 384>}]} {
    %c0 = arith.constant 0 : index
    %c0_0 = arith.constant 0 : index
    %c0_1 = arith.constant 0 : index
    %0 = vector.load %arg2[%c0, %c0_0, %c0_1] : memref<1x8x384xbf16, #tpu.memory_space<vmem>>, vector<1x8x384xbf16>
    %1 = vector.shape_cast %0 : vector<1x8x384xbf16> to vector<8x384xbf16>
    %2 = arith.extf %1 : vector<8x384xbf16> to vector<8x384xf32>
    %c0_2 = arith.constant 0 : index
    %c0_3 = arith.constant 0 : index
    %c0_4 = arith.constant 0 : index
    %3 = vector.load %arg3[%c0_2, %c0_3, %c0_4] : memref<1x8x128xbf16, #tpu.memory_space<vmem>>, vector<1x8x128xbf16>
    %4 = vector.shape_cast %3 : vector<1x8x128xbf16> to vector<8x128xbf16>
    %5 = arith.extf %4 : vector<8x128xbf16> to vector<8x128xf32>
    %6 = tpu.concatenate %2, %5 in 1 : vector<8x384xf32>, vector<8x128xf32> -> vector<8x512xf32>
    %7 = vector.extract_strided_slice %6 {offsets = [0, 0], sizes = [8, 384], strides = [1, 1]} : vector<8x512xf32> to vector<8x384xf32>
    %c0_5 = arith.constant 0 : index
    %c0_6 = arith.constant 0 : index
    %8 = vector.load %arg7[%c0_5, %c0_6] : memref<72x384xf32, #tpu.memory_space<vmem>>, vector<8x384xf32>
    tpu.vector_store %arg7[%c0_5, %c0_6], %7 {strides = array<i32>} : memref<72x384xf32, #tpu.memory_space<vmem>>, vector<8x384xf32>,
    %c511_i32 = arith.constant 511 : i32
    %9 = tpu.dynamic_rotate %6 by %c511_i32 dim 1 : vector<8x512xf32>, i32 -> vector<8x512xf32>
    %10 = vector.extract_strided_slice %9 {offsets = [0, 0], sizes = [8, 384], strides = [1, 1]} : vector<8x512xf32> to vector<8x384xf32>
    %c8 = arith.constant 8 : index
    %c0_7 = arith.constant 0 : index
    %11 = vector.load %arg7[%c8, %c0_7] : memref<72x384xf32, #tpu.memory_space<vmem>>, vector<8x384xf32>
    tpu.vector_store %arg7[%c8, %c0_7], %10 {strides = array<i32>} : memref<72x384xf32, #tpu.memory_space<vmem>>, vector<8x384xf32>,
    %c510_i32 = arith.constant 510 : i32
    %12 = tpu.dynamic_rotate %6 by %c510_i32 dim 1 : vector<8x512xf32>, i32 -> vector<8x512xf32>
    %13 = vector.extract_strided_slice %12 {offsets = [0, 0], sizes = [8, 384], strides = [1, 1]} : vector<8x512xf32> to vector<8x384xf32>
    %c16 = arith.constant 16 : index
    %c0_8 = arith.constant 0 : index
    %14 = vector.load %arg7[%c16, %c0_8] : memref<72x384xf32, #tpu.memory_space<vmem>>, vector<8x384xf32>
    tpu.vector_store %arg7[%c16, %c0_8], %13 {strides = array<i32>} : memref<72x384xf32, #tpu.memory_space<vmem>>, vector<8x384xf32>,
    %c494_i32 = arith.constant 494 : i32
    %15 = tpu.dynamic_rotate %6 by %c494_i32 dim 1 : vector<8x512xf32>, i32 -> vector<8x512xf32>
    %16 = vector.extract_strided_slice %15 {offsets = [0, 0], sizes = [8, 384], strides = [1, 1]} : vector<8x512xf32> to vector<8x384xf32>
    %c24 = arith.constant 24 : index
    %c0_9 = arith.constant 0 : index
    %17 = vector.load %arg7[%c24, %c0_9] : memref<72x384xf32, #tpu.memory_space<vmem>>, vector<8x384xf32>
    tpu.vector_store %arg7[%c24, %c0_9], %16 {strides = array<i32>} : memref<72x384xf32, #tpu.memory_space<vmem>>, vector<8x384xf32>,
    %c493_i32 = arith.constant 493 : i32
    %18 = tpu.dynamic_rotate %6 by %c493_i32 dim 1 : vector<8x512xf32>, i32 -> vector<8x512xf32>
    %19 = vector.extract_strided_slice %18 {offsets = [0, 0], sizes = [8, 384], strides = [1, 1]} : vector<8x512xf32> to vector<8x384xf32>
    %c32 = arith.constant 32 : index
    %c0_10 = arith.constant 0 : index
    %20 = vector.load %arg7[%c32, %c0_10] : memref<72x384xf32, #tpu.memory_space<vmem>>, vector<8x384xf32>
    tpu.vector_store %arg7[%c32, %c0_10], %19 {strides = array<i32>} : memref<72x384xf32, #tpu.memory_space<vmem>>, vector<8x384xf32>,
    %c492_i32 = arith.constant 492 : i32
    %21 = tpu.dynamic_rotate %6 by %c492_i32 dim 1 : vector<8x512xf32>, i32 -> vector<8x512xf32>
    %22 = vector.extract_strided_slice %21 {offsets = [0, 0], sizes = [8, 384], strides = [1, 1]} : vector<8x512xf32> to vector<8x384xf32>
    %c40 = arith.constant 40 : index
    %c0_11 = arith.constant 0 : index
    %23 = vector.load %arg7[%c40, %c0_11] : memref<72x384xf32, #tpu.memory_space<vmem>>, vector<8x384xf32>
    tpu.vector_store %arg7[%c40, %c0_11], %22 {strides = array<i32>} : memref<72x384xf32, #tpu.memory_space<vmem>>, vector<8x384xf32>,
    %c476_i32 = arith.constant 476 : i32
    %24 = tpu.dynamic_rotate %6 by %c476_i32 dim 1 : vector<8x512xf32>, i32 -> vector<8x512xf32>
    %25 = vector.extract_strided_slice %24 {offsets = [0, 0], sizes = [8, 384], strides = [1, 1]} : vector<8x512xf32> to vector<8x384xf32>
    %c48 = arith.constant 48 : index
    %c0_12 = arith.constant 0 : index
    %26 = vector.load %arg7[%c48, %c0_12] : memref<72x384xf32, #tpu.memory_space<vmem>>, vector<8x384xf32>
    tpu.vector_store %arg7[%c48, %c0_12], %25 {strides = array<i32>} : memref<72x384xf32, #tpu.memory_space<vmem>>, vector<8x384xf32>,
    %c475_i32 = arith.constant 475 : i32
    %27 = tpu.dynamic_rotate %6 by %c475_i32 dim 1 : vector<8x512xf32>, i32 -> vector<8x512xf32>
    %28 = vector.extract_strided_slice %27 {offsets = [0, 0], sizes = [8, 384], strides = [1, 1]} : vector<8x512xf32> to vector<8x384xf32>
    %c56 = arith.constant 56 : index
    %c0_13 = arith.constant 0 : index
    %29 = vector.load %arg7[%c56, %c0_13] : memref<72x384xf32, #tpu.memory_space<vmem>>, vector<8x384xf32>
    tpu.vector_store %arg7[%c56, %c0_13], %28 {strides = array<i32>} : memref<72x384xf32, #tpu.memory_space<vmem>>, vector<8x384xf32>,
    %c474_i32 = arith.constant 474 : i32
    %30 = tpu.dynamic_rotate %6 by %c474_i32 dim 1 : vector<8x512xf32>, i32 -> vector<8x512xf32>
    %31 = vector.extract_strided_slice %30 {offsets = [0, 0], sizes = [8, 384], strides = [1, 1]} : vector<8x512xf32> to vector<8x384xf32>
    %c64 = arith.constant 64 : index
    %c0_14 = arith.constant 0 : index
    %32 = vector.load %arg7[%c64, %c0_14] : memref<72x384xf32, #tpu.memory_space<vmem>>, vector<8x384xf32>
    tpu.vector_store %arg7[%c64, %c0_14], %31 {strides = array<i32>} : memref<72x384xf32, #tpu.memory_space<vmem>>, vector<8x384xf32>,
    %c0_15 = arith.constant 0 : index
    %c0_16 = arith.constant 0 : index
    %33 = vector.load %arg4[%c0_15, %c0_16] : memref<16x72xbf16, #tpu.memory_space<vmem>>, vector<16x72xbf16>
    %c0_17 = arith.constant 0 : index
    %c0_18 = arith.constant 0 : index
    %34 = vector.load %arg7[%c0_17, %c0_18] : memref<72x384xf32, #tpu.memory_space<vmem>>, vector<72x384xf32>
    %35 = arith.truncf %34 : vector<72x384xf32> to vector<72x384xbf16>
    %cst = arith.constant dense<0.000000e+00> : vector<16x384xf32>
    %36 = tpu.matmul %33, %35, %cst {dimension_numbers = #tpu.dot_dimension_numbers<[1], [0], [0], [1], [0, 0, 1, 1], [], []>} : vector<16x72xbf16>, vector<72x384xbf16>, vector<16x384xf32> -> vector<16x384xf32>
    %c0_19 = arith.constant 0 : index
    %c0_20 = arith.constant 0 : index
    %37 = vector.load %arg5[%c0_19, %c0_20] : memref<16x1xf32, #tpu.memory_space<vmem>>, vector<16x1xf32>
    %38 = vector.broadcast %37 : vector<16x1xf32> to vector<16x384xf32>
    %39 = arith.addf %36, %38 : vector<16x384xf32>
    %c0_21 = arith.constant 0 : index
    %c0_22 = arith.constant 0 : index
    %c0_23 = arith.constant 0 : index
    %40 = vector.load %arg6[%c0_21, %c0_22, %c0_23] : memref<1x16x384xf32, #tpu.memory_space<vmem>>, vector<1x16x384xf32>
    %41 = vector.shape_cast %40 : vector<1x16x384xf32> to vector<16x384xf32>
    %42 = vector.shape_cast %39 : vector<16x384xf32> to vector<1x16x384xf32>
    tpu.vector_store %arg6[%c0_21, %c0_22, %c0_23], %42 {strides = array<i32>} : memref<1x16x384xf32, #tpu.memory_space<vmem>>, vector<1x16x384xf32>,
    return
  }
  func.func @transform_0(%arg0: i32, %arg1: i32) -> (i32, i32, i32) {
    %c0_i32 = arith.constant 0 : i32
    %c0_i32_0 = arith.constant 0 : i32
    return %arg0, %c0_i32, %arg1 : i32, i32, i32
  }
  func.func @transform_1(%arg0: i32, %arg1: i32) -> (i32, i32, i32) {
    %c1_i32 = arith.constant 1 : i32
    %0 = arith.addi %arg1, %c1_i32 : i32
    %c3_i32 = arith.constant 3 : i32
    %1 = arith.muli %0, %c3_i32 : i32
    %c0_i32 = arith.constant 0 : i32
    %c0_i32_0 = arith.constant 0 : i32
    return %arg0, %c0_i32, %1 : i32, i32, i32
  }
  func.func @transform_2(%arg0: i32, %arg1: i32) -> (i32, i32) {
    %c0_i32 = arith.constant 0 : i32
    %c0_i32_0 = arith.constant 0 : i32
    %c0_i32_1 = arith.constant 0 : i32
    return %c0_i32, %c0_i32_0 : i32, i32
  }
  func.func @transform_3(%arg0: i32, %arg1: i32) -> (i32, i32) {
    %c0_i32 = arith.constant 0 : i32
    %c0_i32_0 = arith.constant 0 : i32
    %c0_i32_1 = arith.constant 0 : i32
    return %c0_i32, %c0_i32_0 : i32, i32
  }
  func.func @transform_4(%arg0: i32, %arg1: i32) -> (i32, i32, i32) {
    %c0_i32 = arith.constant 0 : i32
    %c0_i32_0 = arith.constant 0 : i32
    return %arg0, %c0_i32, %arg1 : i32, i32, i32
  }
}

</mosaic_0001>

<llo_original>
// kernel: complex_conv2d.1
$region0: #{complex_conv2d.1}
  #allocation0 [shape = 'u32[]', space=smem, size = 0x4, offset = 0x4, fixed_abs, tag = 'smem constant byte address 0x4 - core index']
  #allocation1 [shape = 'u32[72,128]{1,0:T(1,128)}', space=vmem, size = 0x9000, scoped, tag = 'internal scratch']
  #allocation2 [shape = 'f32[72,384]{1,0:T(8,128)}', space=vmem, size = 0x1b000, scoped, tag = 'scratch operand']
  %s0 = inlined_call_operand.vmem [shape: bf16[2,8,768], index: 0, kind: input, shape index: {}, may-alias: {0,1}]
  %s1 = inlined_call_operand.vmem [shape: bf16[2,8,768], index: 1, kind: input, shape index: {}, may-alias: {0,1}]
  %s2 = inlined_call_operand.vmem [shape: bf16[16,72], index: 2, kind: input, shape index: {}]
  %s3 = inlined_call_operand.vmem [shape: f32[16,1], index: 3, kind: input, shape index: {}]
  %s4 = inlined_call_operand.vmem [shape: f32[2,16,384], index: 4, kind: output, shape index: {}]
  %s5 = sld [smem:[#allocation0]]
  $region49: #{complex_conv2d.1} parent=0
    _
  %s7 = ssub.s32 1, %s5
  %s8 = scalar_select 0, %s7, %s5
  loop: start=0, step=1, limit=4
  $region2: #{complex_conv2d.1} parent=0 // loop_pre_header
    _
  $region3: #{complex_conv2d.1} parent=0 // loop_header
    %s10 = sphi 0, %s14
    %p11 = scmp.ge.s32.totalorder %s10, 4
    %s17 = sphi 0, %s29
    %s18 = sphi 0, %s25
    %s19 = sphi 0, %s17
    %s20 = sphi 0, %s18
    %s21 = sphi 0, %s19
    %s22 = sphi 0, %s20
    %s34 = sphi 0, %s36
    %s37 = sphi 0, %s34
    %s38 = sphi 0, %s37
    %s54 = sphi 0, %s38
    %s66 = sphi 0, %s68
    %s69 = sphi 0, %s66
    %s70 = sphi 0, %s69
    %s86 = sphi 0, %s70
    %s90 = sphi 0, %s90
    %s92 = sphi 0, %s90
    %s93 = sphi 0, %s92
    %s107 = sphi 0, %s93
    %s111 = sphi 0, %s111
    %s113 = sphi 0, %s111
    %s114 = sphi 0, %s113
    %s128 = sphi 0, %s114
    %s136 = sphi 0, %s138
    %s139 = sphi 0, %s136
    %s140 = sphi 0, %s139
    %s156 = sphi 0, %s140
  $region4: #{complex_conv2d.1} parent=0 // loop_header_branch
    %13 = sbr.rel (%p11) target = $region8
  $region5: #{complex_conv2d.1} parent=0 // loop_body
    %s15 = ssub.s32 %s10, 1
    %s16 = ssub.s32 %s10, 2
    %s23 = sadd.s32 1, %s18
    %p24 = scmp.ge.s32.totalorder %s23, 1
    %s25 = scalar_select %p24, 0, %s23
    %s26 = sadd.s32 1, %s17
    %s27 = scalar_select %p24, %s26, %s17
    %p28 = scmp.ge.s32.totalorder %s27, 2
    %s29 = scalar_select %p28, 0, %s27
    %s30 = ssub.s32 %s17, %s29
    %s31 = ssub.s32 %s18, %s25
    %s32 = sor.u32 %s30, %s31
    %p33 = scmp.eq.s32.totalorder %s32, 0
    %s35 = sadd.s32 %s34, 1
    %s36 = scalar_select %p33, %s34, %s35
    %p39 = pneg %p33
    %p40 = scmp.eq.s32.totalorder %s10, 1
    %p41 = por %p39, %p40
    %p42 = scmp.ne.s32.totalorder %s34, %s37
    %p43 = scmp.eq.s32.totalorder %s10, 0
    %p44 = por %p42, %p43
    %p45 = scmp.ne.s32.totalorder %s34, %s37
    %p46 = scmp.eq.s32.totalorder %s15, 1
    %p47 = por %p45, %p46
    %p48 = scmp.ne.s32.totalorder %s37, %s38
    %p49 = scmp.eq.s32.totalorder %s15, 0
    %p50 = por %p48, %p49
    %p51 = scmp.ne.s32.totalorder %s37, %s38
    %p52 = scmp.eq.s32.totalorder %s16, 1
    %p53 = por %p51, %p52
    %p55 = scmp.ne.s32.totalorder %s38, %s54
    %p56 = scmp.eq.s32.totalorder %s16, 0
    %p57 = por %p55, %p56
    %s58 = sadd.s32 %s18, 1
    %s59 = smul.u32 %s58, 3
    %s60 = sadd.s32 %s25, 1
    %s61 = smul.u32 %s60, 3
    %s62 = ssub.s32 %s17, %s29
    %s63 = ssub.s32 %s59, %s61
    %s64 = sor.u32 %s62, %s63
    %p65 = scmp.eq.s32.totalorder %s64, 0
    %s67 = sadd.s32 %s66, 1
    %s68 = scalar_select %p65, %s66, %s67
    %p71 = pneg %p65
    %p72 = scmp.eq.s32.totalorder %s10, 1
    %p73 = por %p71, %p72
    %p74 = scmp.ne.s32.totalorder %s66, %s69
    %p75 = scmp.eq.s32.totalorder %s10, 0
    %p76 = por %p74, %p75
    %p77 = scmp.ne.s32.totalorder %s66, %s69
    %p78 = scmp.eq.s32.totalorder %s15, 1
    %p79 = por %p77, %p78
    %p80 = scmp.ne.s32.totalorder %s69, %s70
    %p81 = scmp.eq.s32.totalorder %s15, 0
    %p82 = por %p80, %p81
    %p83 = scmp.ne.s32.totalorder %s69, %s70
    %p84 = scmp.eq.s32.totalorder %s16, 1
    %p85 = por %p83, %p84
    %p87 = scmp.ne.s32.totalorder %s70, %s86
    %p88 = scmp.eq.s32.totalorder %s16, 0
    %p89 = por %p87, %p88
    %s91 = sadd.s32 %s90, 1
    %p94 = scmp.eq.s32.totalorder %s10, 1
    %p95 = scmp.ne.s32.totalorder %s90, %s92
    %p96 = scmp.eq.s32.totalorder %s10, 0
    %p97 = por %p95, %p96
    %p98 = scmp.ne.s32.totalorder %s90, %s92
    %p99 = scmp.eq.s32.totalorder %s15, 1
    %p100 = por %p98, %p99
    %p101 = scmp.ne.s32.totalorder %s92, %s93
    %p102 = scmp.eq.s32.totalorder %s15, 0
    %p103 = por %p101, %p102
    %p104 = scmp.ne.s32.totalorder %s92, %s93
    %p105 = scmp.eq.s32.totalorder %s16, 1
    %p106 = por %p104, %p105
    %p108 = scmp.ne.s32.totalorder %s93, %s107
    %p109 = scmp.eq.s32.totalorder %s16, 0
    %p110 = por %p108, %p109
    %s112 = sadd.s32 %s111, 1
    %p115 = scmp.eq.s32.totalorder %s10, 1
    %p116 = scmp.ne.s32.totalorder %s111, %s113
    %p117 = scmp.eq.s32.totalorder %s10, 0
    %p118 = por %p116, %p117
    %p119 = scmp.ne.s32.totalorder %s111, %s113
    %p120 = scmp.eq.s32.totalorder %s15, 1
    %p121 = por %p119, %p120
    %p122 = scmp.ne.s32.totalorder %s113, %s114
    %p123 = scmp.eq.s32.totalorder %s15, 0
    %p124 = por %p122, %p123
    %p125 = scmp.ne.s32.totalorder %s113, %s114
    %p126 = scmp.eq.s32.totalorder %s16, 1
    %p127 = por %p125, %p126
    %p129 = scmp.ne.s32.totalorder %s114, %s128
    %p130 = scmp.eq.s32.totalorder %s16, 0
    %p131 = por %p129, %p130
    %s132 = ssub.s32 %s17, %s29
    %s133 = ssub.s32 %s18, %s25
    %s134 = sor.u32 %s132, %s133
    %p135 = scmp.eq.s32.totalorder %s134, 0
    %s137 = sadd.s32 %s136, 1
    %s138 = scalar_select %p135, %s136, %s137
    %p141 = pneg %p135
    %p142 = scmp.eq.s32.totalorder %s10, 1
    %p143 = por %p141, %p142
    %p144 = scmp.ne.s32.totalorder %s136, %s139
    %p145 = scmp.eq.s32.totalorder %s10, 0
    %p146 = por %p144, %p145
    %p147 = scmp.ne.s32.totalorder %s136, %s139
    %p148 = scmp.eq.s32.totalorder %s15, 1
    %p149 = por %p147, %p148
    %p150 = scmp.ne.s32.totalorder %s139, %s140
    %p151 = scmp.eq.s32.totalorder %s15, 0
    %p152 = por %p150, %p151
    %p153 = scmp.ne.s32.totalorder %s139, %s140
    %p154 = scmp.eq.s32.totalorder %s16, 1
    %p155 = por %p153, %p154
    %p157 = scmp.ne.s32.totalorder %s140, %s156
    %p158 = scmp.eq.s32.totalorder %s16, 0
    %p159 = por %p157, %p158
    %p160 = scmp.le.s32.totalorder 1, %s10
    %p161 = scmp.lt.s32.totalorder %s10, 3
    %p162 = pnand %p160, %p161
    %p163 = pneg %p162
    // Predicated region
    $region9: #{complex_conv2d.1} parent=5 // pred_check
      _
    $region10: #{complex_conv2d.1} parent=5 // pred_check_branch
      %165 = sbr.rel (%p162) target = $region12
    $region11: #{complex_conv2d.1} parent=5 // pred_region
      %s166 = ssub.s32 %s10, 1
      // Predicated region
      $region13: #{complex_conv2d.1} parent=11 // pred_check
        %p167 = pneg %p103
      $region14: #{complex_conv2d.1} parent=11 // pred_check_branch
        %169 = sbr.rel (%p167) target = $region16
      $region15: #{complex_conv2d.1} parent=11 // pred_region
        _
      $region16: #{complex_conv2d.1} parent=11 // pred_fallthru
        _
      // Predicated region
      $region17: #{complex_conv2d.1} parent=11 // pred_check
        %p170 = pneg %p124
      $region18: #{complex_conv2d.1} parent=11 // pred_check_branch
        %172 = sbr.rel (%p170) target = $region20
      $region19: #{complex_conv2d.1} parent=11 // pred_region
        _
      $region20: #{complex_conv2d.1} parent=11 // pred_fallthru
        _
    $region12: #{complex_conv2d.1} parent=5 // pred_fallthru
      _
    %p173 = scmp.lt.s32.totalorder %s10, 2
    // Predicated region
    $region21: #{complex_conv2d.1} parent=5 // pred_check
      %p174 = pneg %p173
    $region22: #{complex_conv2d.1} parent=5 // pred_check_branch
      %176 = sbr.rel (%p174) target = $region24
    $region23: #{complex_conv2d.1} parent=5 // pred_region
      // Predicated region
      $region25: #{complex_conv2d.1} parent=23 // pred_check
        %p177 = pneg %p44
      $region26: #{complex_conv2d.1} parent=23 // pred_check_branch
        %179 = sbr.rel (%p177) target = $region28
      $region27: #{complex_conv2d.1} parent=23 // pred_region
        %s180 = smul.u32 3, %s18
        %p181 = scmp.lt.s32.totalorder %s17, 1
        %s182 = scalar_select %p181, %s17, 1
        %p183 = scmp.lt.s32.totalorder %s180, 5
        %s184 = scalar_select %p183, %s180, 5
        %s185 = smul.addr %s182, 6
        %s186 = sadd.s32 %s184, %s185
        %s187 = smul.addr %s186, 4
        %s188 = scalar_lea.vmem %s0, %s187
        %s189 = smul.u32 3, %s18
      $region28: #{complex_conv2d.1} parent=23 // pred_fallthru
        _
      // Predicated region
      $region29: #{complex_conv2d.1} parent=23 // pred_check
        %p190 = pneg %p76
      $region30: #{complex_conv2d.1} parent=23 // pred_check_branch
        %192 = sbr.rel (%p190) target = $region32
      $region31: #{complex_conv2d.1} parent=23 // pred_region
        %s193 = sadd.s32 %s18, 1
        %s194 = smul.u32 %s193, 3
        %p195 = scmp.lt.s32.totalorder %s17, 1
        %s196 = scalar_select %p195, %s17, 1
        %p197 = scmp.lt.s32.totalorder %s194, 5
        %s198 = scalar_select %p197, %s194, 5
        %s199 = smul.addr %s196, 6
        %s200 = sadd.s32 %s198, %s199
        %s201 = smul.addr %s200, 4
        %s202 = scalar_lea.vmem %s1, %s201
        %s203 = sadd.s32 %s18, 1
        %s204 = smul.u32 %s203, 3
      $region32: #{complex_conv2d.1} parent=23 // pred_fallthru
        _
    $region24: #{complex_conv2d.1} parent=5 // pred_fallthru
      _
    %p205 = scmp.le.s32.totalorder 1, %s10
    %p206 = scmp.lt.s32.totalorder %s10, 3
    %p207 = pnand %p205, %p206
    %p208 = pneg %p207
    // Predicated region
    $region33: #{complex_conv2d.1} parent=5 // pred_check
      _
    $region34: #{complex_conv2d.1} parent=5 // pred_check_branch
      %210 = sbr.rel (%p207) target = $region36
    $region35: #{complex_conv2d.1} parent=5 // pred_region
      %s211 = ssub.s32 %s10, 1
      %s212 = smul.u32 3, %s20
      %p213 = scmp.lt.s32.totalorder %s19, 1
      %s214 = scalar_select %p213, %s19, 1
      %p215 = scmp.lt.s32.totalorder %s212, 5
      %s216 = scalar_select %p215, %s212, 5
      %s217 = smul.addr %s214, 6
      %s218 = sadd.s32 %s216, %s217
      %s219 = smul.addr %s218, 4
      %s220 = scalar_lea.vmem %s0, %s219
      %p221 = pneg %p50
      %p222 = pneg %p47
      %s223 = sadd.s32 %s20, 1
      %s224 = smul.u32 %s223, 3
      %p225 = scmp.lt.s32.totalorder %s19, 1
      %s226 = scalar_select %p225, %s19, 1
      %p227 = scmp.lt.s32.totalorder %s224, 5
      %s228 = scalar_select %p227, %s224, 5
      %s229 = smul.addr %s226, 6
      %s230 = sadd.s32 %s228, %s229
      %s231 = smul.addr %s230, 4
      %s232 = scalar_lea.vmem %s1, %s231
      %p233 = pneg %p82
      %p234 = pneg %p79
      %p235 = pneg %p103
      %p236 = pneg %p100
      %p237 = pneg %p124
      %p238 = pneg %p121
      %p239 = pneg %p152
      %p240 = pneg %p149
      %s241 = smul.u32 3, %s20
      %p242 = scmp.lt.s32.totalorder %s19, 1
      %s243 = scalar_select %p242, %s19, 1
      %p244 = scmp.lt.s32.totalorder %s241, 2
      %s245 = scalar_select %p244, %s241, 2
      %s246 = smul.addr %s243, 6
      %s247 = sadd.s32 %s245, %s246
      %s248 = smul.addr %s247, 8
      %s249 = scalar_lea.vmem %s4, %s248
      %s250 = smul.u32 3, %s20
      %p251 = scmp.lt.s32.totalorder %s19, 1
      %s252 = scalar_select %p251, %s19, 1
      %p253 = scmp.lt.s32.totalorder %s250, 5
      %s254 = scalar_select %p253, %s250, 5
      %s255 = smul.addr %s252, 6
      %s256 = sadd.s32 %s254, %s255
      %s257 = smul.addr %s256, 4
      %s258 = scalar_lea.vmem %s0, %s257
      %s259 = smul.u32 3, %s20
      %s260 = sadd.s32 %s20, 1
      %s261 = smul.u32 %s260, 3
      %p262 = scmp.lt.s32.totalorder %s19, 1
      %s263 = scalar_select %p262, %s19, 1
      %p264 = scmp.lt.s32.totalorder %s261, 5
      %s265 = scalar_select %p264, %s261, 5
      %s266 = smul.addr %s263, 6
      %s267 = sadd.s32 %s265, %s266
      %s268 = smul.addr %s267, 4
      %s269 = scalar_lea.vmem %s1, %s268
      %s270 = sadd.s32 %s20, 1
      %s271 = smul.u32 %s270, 3
      %s272 = smul.u32 3, %s20
      %p273 = scmp.lt.s32.totalorder %s19, 1
      %s274 = scalar_select %p273, %s19, 1
      %p275 = scmp.lt.s32.totalorder %s272, 2
      %s276 = scalar_select %p275, %s272, 2
      %s277 = smul.addr %s274, 6
      %s278 = sadd.s32 %s276, %s277
      %s279 = smul.addr %s278, 8
      %s280 = scalar_lea.vmem %s4, %s279
      %s281 = smul.u32 3, %s20
      %v283 = vld [vmem:[%s258] sm:$0xff]
      %v284 = vld [vmem:[%s258 + $0x8] sm:$0xf]
      %v285 = vunpack.c.l.bf16 %v283
      %v286 = vunpack.c.h.bf16 %v283
      %v287 = vunpack.c.l.bf16 %v284
      %v288 = vld [vmem:[%s269] sm:$0xf]
      %v289 = vunpack.c.l.bf16 %v288
      %290 = vst [vmem:[#allocation2] sm:$0xff] %v285
      %291 = vst [vmem:[#allocation2 + $0x8] sm:$0xff] %v286
      %292 = vst [vmem:[#allocation2 + $0x10] sm:$0xff] %v287
      %293 = vrot.lane.b32.xlu0 %v285, 127
      %v294 = vpop.permute.xlu0 %293
      %295 = vrot.lane.b32.xlu0 %v286, 127
      %v296 = vpop.permute.xlu0 %295
      %297 = vrot.lane.b32.xlu0 %v287, 127
      %v298 = vpop.permute.xlu0 %297
      %299 = vrot.lane.b32.xlu0 %v289, 127
      %v300 = vpop.permute.xlu0 %299
      %v301 = vlaneseq
      %v302 = vand.u32 %v301, 127
      %vm303 = vcmp.lt.s32.totalorder %v302, 127
      %v304 = vsel %vm303, %v298, %v300
      %v305 = vsel %vm303, %v296, %v298
      %v306 = vsel %vm303, %v294, %v296
      %307 = vst [vmem:[#allocation2 + $0x18] sm:$0xff] %v306
      %308 = vst [vmem:[#allocation2 + $0x20] sm:$0xff] %v305
      %309 = vst [vmem:[#allocation2 + $0x28] sm:$0xff] %v304
      %310 = vrot.lane.b32.xlu0 %v285, 126
      %v311 = vpop.permute.xlu0 %310
      %312 = vrot.lane.b32.xlu0 %v286, 126
      %v313 = vpop.permute.xlu0 %312
      %314 = vrot.lane.b32.xlu0 %v287, 126
      %v315 = vpop.permute.xlu0 %314
      %316 = vrot.lane.b32.xlu0 %v289, 126
      %v317 = vpop.permute.xlu0 %316
      %vm318 = vcmp.lt.s32.totalorder %v302, 126
      %v319 = vsel %vm318, %v315, %v317
      %v320 = vsel %vm318, %v313, %v315
      %v321 = vsel %vm318, %v311, %v313
      %322 = vst [vmem:[#allocation2 + $0x30] sm:$0xff] %v321
      %323 = vst [vmem:[#allocation2 + $0x38] sm:$0xff] %v320
      %324 = vst [vmem:[#allocation2 + $0x40] sm:$0xff] %v319
      %325 = vrot.lane.b32.xlu0 %v285, 110
      %v326 = vpop.permute.xlu0 %325
      %327 = vrot.lane.b32.xlu0 %v286, 110
      %v328 = vpop.permute.xlu0 %327
      %329 = vrot.lane.b32.xlu0 %v287, 110
      %v330 = vpop.permute.xlu0 %329
      %331 = vrot.lane.b32.xlu0 %v289, 110
      %v332 = vpop.permute.xlu0 %331
      %vm333 = vcmp.lt.s32.totalorder %v302, 110
      %v334 = vsel %vm333, %v330, %v332
      %v335 = vsel %vm333, %v328, %v330
      %v336 = vsel %vm333, %v326, %v328
      %337 = vst [vmem:[#allocation2 + $0x48] sm:$0xff] %v336
      %338 = vst [vmem:[#allocation2 + $0x50] sm:$0xff] %v335
      %339 = vst [vmem:[#allocation2 + $0x58] sm:$0xff] %v334
      %340 = vrot.lane.b32.xlu0 %v285, 109
      %v341 = vpop.permute.xlu0 %340
      %342 = vrot.lane.b32.xlu0 %v286, 109
      %v343 = vpop.permute.xlu0 %342
      %344 = vrot.lane.b32.xlu0 %v287, 109
      %v345 = vpop.permute.xlu0 %344
      %346 = vrot.lane.b32.xlu0 %v289, 109
      %v347 = vpop.permute.xlu0 %346
      %vm348 = vcmp.lt.s32.totalorder %v302, 109
      %v349 = vsel %vm348, %v345, %v347
      %v350 = vsel %vm348, %v343, %v345
      %v351 = vsel %vm348, %v341, %v343
      %352 = vst [vmem:[#allocation2 + $0x60] sm:$0xff] %v351
      %353 = vst [vmem:[#allocation2 + $0x68] sm:$0xff] %v350
      %354 = vst [vmem:[#allocation2 + $0x70] sm:$0xff] %v349
      %355 = vrot.lane.b32.xlu0 %v285, 108
      %v356 = vpop.permute.xlu0 %355
      %357 = vrot.lane.b32.xlu0 %v286, 108
      %v358 = vpop.permute.xlu0 %357
      %359 = vrot.lane.b32.xlu0 %v287, 108
      %v360 = vpop.permute.xlu0 %359
      %361 = vrot.lane.b32.xlu0 %v289, 108
      %v362 = vpop.permute.xlu0 %361
      %vm363 = vcmp.lt.s32.totalorder %v302, 108
      %v364 = vsel %vm363, %v360, %v362
      %v365 = vsel %vm363, %v358, %v360
      %v366 = vsel %vm363, %v356, %v358
      %367 = vst [vmem:[#allocation2 + $0x78] sm:$0xff] %v366
      %368 = vst [vmem:[#allocation2 + $0x80] sm:$0xff] %v365
      %369 = vst [vmem:[#allocation2 + $0x88] sm:$0xff] %v364
      %370 = vrot.lane.b32.xlu0 %v285, 92
      %v371 = vpop.permute.xlu0 %370
      %372 = vrot.lane.b32.xlu0 %v286, 92
      %v373 = vpop.permute.xlu0 %372
      %374 = vrot.lane.b32.xlu0 %v287, 92
      %v375 = vpop.permute.xlu0 %374
      %376 = vrot.lane.b32.xlu0 %v289, 92
      %v377 = vpop.permute.xlu0 %376
      %vm378 = vcmp.lt.s32.totalorder %v302, 92
      %v379 = vsel %vm378, %v375, %v377
      %v380 = vsel %vm378, %v373, %v375
      %v381 = vsel %vm378, %v371, %v373
      %382 = vst [vmem:[#allocation2 + $0x90] sm:$0xff] %v381
      %383 = vst [vmem:[#allocation2 + $0x98] sm:$0xff] %v380
      %384 = vst [vmem:[#allocation2 + $0xa0] sm:$0xff] %v379
      %385 = vrot.lane.b32.xlu0 %v285, 91
      %v386 = vpop.permute.xlu0 %385
      %387 = vrot.lane.b32.xlu0 %v286, 91
      %v388 = vpop.permute.xlu0 %387
      %389 = vrot.lane.b32.xlu0 %v287, 91
      %v390 = vpop.permute.xlu0 %389
      %391 = vrot.lane.b32.xlu0 %v289, 91
      %v392 = vpop.permute.xlu0 %391
      %vm393 = vcmp.lt.s32.totalorder %v302, 91
      %v394 = vsel %vm393, %v390, %v392
      %v395 = vsel %vm393, %v388, %v390
      %v396 = vsel %vm393, %v386, %v388
      %397 = vst [vmem:[#allocation2 + $0xa8] sm:$0xff] %v396
      %398 = vst [vmem:[#allocation2 + $0xb0] sm:$0xff] %v395
      %399 = vst [vmem:[#allocation2 + $0xb8] sm:$0xff] %v394
      %400 = vrot.lane.b32.xlu0 %v285, 90
      %v401 = vpop.permute.xlu0 %400
      %402 = vrot.lane.b32.xlu0 %v286, 90
      %v403 = vpop.permute.xlu0 %402
      %404 = vrot.lane.b32.xlu0 %v287, 90
      %v405 = vpop.permute.xlu0 %404
      %406 = vrot.lane.b32.xlu0 %v289, 90
      %v407 = vpop.permute.xlu0 %406
      %vm408 = vcmp.lt.s32.totalorder %v302, 90
      %v409 = vsel %vm408, %v405, %v407
      %v410 = vsel %vm408, %v403, %v405
      %v411 = vsel %vm408, %v401, %v403
      %412 = vst [vmem:[#allocation2 + $0xc0] sm:$0xff] %v411
      %413 = vst [vmem:[#allocation2 + $0xc8] sm:$0xff] %v410
      %414 = vst [vmem:[#allocation2 + $0xd0] sm:$0xff] %v409
      %v415 = vld [vmem:[%s2] sm:$0xf]
      %v416 = vld [vmem:[%s2 + $0x4] sm:$0xf]
      %v417 = vld [vmem:[#allocation2] sm:$0xff]
      %v418 = vld [vmem:[#allocation2 + $0x8] sm:$0xff]
      %v419 = vld [vmem:[#allocation2 + $0x10] sm:$0xff]
      %v420 = vld [vmem:[#allocation2 + $0x18] sm:$0xff]
      %v421 = vld [vmem:[#allocation2 + $0x20] sm:$0xff]
      %v422 = vld [vmem:[#allocation2 + $0x28] sm:$0xff]
      %v423 = vld [vmem:[#allocation2 + $0x30] sm:$0xff]
      %v424 = vld [vmem:[#allocation2 + $0x38] sm:$0xff]
      %v425 = vld [vmem:[#allocation2 + $0x40] sm:$0xff]
      %v426 = vld [vmem:[#allocation2 + $0x48] sm:$0xff]
      %v427 = vld [vmem:[#allocation2 + $0x50] sm:$0xff]
      %v428 = vld [vmem:[#allocation2 + $0x58] sm:$0xff]
      %v429 = vld [vmem:[#allocation2 + $0x60] sm:$0xff]
      %v430 = vld [vmem:[#allocation2 + $0x68] sm:$0xff]
      %v431 = vld [vmem:[#allocation2 + $0x70] sm:$0xff]
      %v432 = vld [vmem:[#allocation2 + $0x78] sm:$0xff]
      %v433 = vld [vmem:[#allocation2 + $0x80] sm:$0xff]
      %v434 = vld [vmem:[#allocation2 + $0x88] sm:$0xff]
      %v435 = vld [vmem:[#allocation2 + $0x90] sm:$0xff]
      %v436 = vld [vmem:[#allocation2 + $0x98] sm:$0xff]
      %v437 = vld [vmem:[#allocation2 + $0xa0] sm:$0xff]
      %v438 = vld [vmem:[#allocation2 + $0xa8] sm:$0xff]
      %v439 = vld [vmem:[#allocation2 + $0xb0] sm:$0xff]
      %v440 = vld [vmem:[#allocation2 + $0xb8] sm:$0xff]
      %v441 = vld [vmem:[#allocation2 + $0xc0] sm:$0xff]
      %v442 = vld [vmem:[#allocation2 + $0xc8] sm:$0xff]
      %v443 = vld [vmem:[#allocation2 + $0xd0] sm:$0xff]
      %v444 = vpack.c.bf16 %v420, %v417
      %v445 = vpack.c.bf16 %v421, %v418
      %v446 = vpack.c.bf16 %v422, %v419
      %v447 = vpack.c.bf16 %v426, %v423
      %v448 = vpack.c.bf16 %v427, %v424
      %v449 = vpack.c.bf16 %v428, %v425
      %v450 = vpack.c.bf16 %v432, %v429
      %v451 = vpack.c.bf16 %v433, %v430
      %v452 = vpack.c.bf16 %v434, %v431
      %v453 = vpack.c.bf16 %v438, %v435
      %v454 = vpack.c.bf16 %v439, %v436
      %v455 = vpack.c.bf16 %v440, %v437
      %v456 = vpack.c.bf16 %v441, %v441
      %v457 = vpack.c.bf16 %v442, %v442
      %v458 = vpack.c.bf16 %v443, %v443
      %v459 = vld [vmem:[%s3] sm:$0xff]
      %v460 = vld [vmem:[%s3 + $0x8] sm:$0xff]
      %462 = vset.pattern.permute.xlu0 0
      %463 = vperm.xlu0 %462, %v459
      %v464 = vpop.permute.xlu0 %463
      %467 = vset.pattern.permute.xlu0 0
      %468 = vperm.xlu0 %467, %v460
      %v469 = vpop.permute.xlu0 %468
      %v473 = vunpack.c.l.b16 %v415
      %v474 = vunpack.c.l.b16 %v416
      %v475 = vpack.c.b16 %v474, %v473
      %vm476 = vcmask 588800
      %v478 = vsel %vm476, %v475, 0
      %vm480 = vcmask 1043456
      %v482 = vsel %vm480, %v456, 0
      %v485 = vsel %vm480, %v457, 0
      %v488 = vsel %vm480, %v458, 0
      %490 = vmatpush.bf16.msra.mxu0 0
      %491 = vmatpush.bf16.msra.mxu0 0
      %492 = vmatpush.bf16.msra.mxu0 0
      %493 = vmatpush.bf16.msra.mxu0 %v482
      %494 = vmatpush.bf16.msra.mxu0 %v453
      %495 = vmatpush.bf16.msra.mxu0 %v450
      %496 = vmatpush.bf16.msra.mxu0 %v447
      %497 = vmatpush.bf16.msra.mxu0 %v444
      %498 = vmatmul.bf16.gmra.mxu0 %v478
      %v499 = vpop.f32.mrf.mxu0
      %v500 = vadd.f32 %v464, %v499
      %v501 = vpop.f32.mrf.mxu0
      %v502 = vadd.f32 %v469, %v501
      %503 = vdwg.mxu0
      %504 = vmatpush.bf16.msra.mxu0 0
      %505 = vmatpush.bf16.msra.mxu0 0
      %506 = vmatpush.bf16.msra.mxu0 0
      %507 = vmatpush.bf16.msra.mxu0 %v485
      %508 = vmatpush.bf16.msra.mxu0 %v454
      %509 = vmatpush.bf16.msra.mxu0 %v451
      %510 = vmatpush.bf16.msra.mxu0 %v448
      %511 = vmatpush.bf16.msra.mxu0 %v445
      %512 = vmatmul.bf16.gmra.mxu0 %v478
      %v513 = vpop.f32.mrf.mxu0
      %v514 = vadd.f32 %v464, %v513
      %v515 = vpop.f32.mrf.mxu0
      %v516 = vadd.f32 %v469, %v515
      %517 = vdwg.mxu0
      %518 = vmatpush.bf16.msra.mxu0 0
      %519 = vmatpush.bf16.msra.mxu0 0
      %520 = vmatpush.bf16.msra.mxu0 0
      %521 = vmatpush.bf16.msra.mxu0 %v488
      %522 = vmatpush.bf16.msra.mxu0 %v455
      %523 = vmatpush.bf16.msra.mxu0 %v452
      %524 = vmatpush.bf16.msra.mxu0 %v449
      %525 = vmatpush.bf16.msra.mxu0 %v446
      %526 = vmatmul.bf16.gmra.mxu0 %v478
      %v527 = vpop.f32.mrf.mxu0
      %v528 = vadd.f32 %v464, %v527
      %v529 = vpop.f32.mrf.mxu0
      %v530 = vadd.f32 %v469, %v529
      %531 = vdwg.mxu0
      %532 = vst [vmem:[%s280] sm:$0xff] %v500
      %533 = vst [vmem:[%s280 + $0x8] sm:$0xff] %v514
      %534 = vst [vmem:[%s280 + $0x10] sm:$0xff] %v528
      %535 = vst [vmem:[%s280 + $0x18] sm:$0xff] %v502
      %536 = vst [vmem:[%s280 + $0x20] sm:$0xff] %v516
      %537 = vst [vmem:[%s280 + $0x28] sm:$0xff] %v530
      %s538 = smul.u32 3, %s20
      %p539 = scmp.lt.s32.totalorder %s19, 1
      %s540 = scalar_select %p539, %s19, 1
      %p541 = scmp.lt.s32.totalorder %s538, 2
      %s542 = scalar_select %p541, %s538, 2
      %s543 = smul.addr %s540, 6
      %s544 = sadd.s32 %s542, %s543
      %s545 = smul.addr %s544, 8
      %s546 = scalar_lea.vmem %s4, %s545
      // Predicated region
      $region37: #{complex_conv2d.1} parent=35 // pred_check
        %p547 = pneg %p149
      $region38: #{complex_conv2d.1} parent=35 // pred_check_branch
        %549 = sbr.rel (%p547) target = $region40
      $region39: #{complex_conv2d.1} parent=35 // pred_region
        %s550 = smul.u32 3, %s20
      $region40: #{complex_conv2d.1} parent=35 // pred_fallthru
        _
    $region36: #{complex_conv2d.1} parent=5 // pred_fallthru
      _
    %p551 = scmp.le.s32.totalorder 2, %s10
    // Predicated region
    $region41: #{complex_conv2d.1} parent=5 // pred_check
      %p552 = pneg %p551
    $region42: #{complex_conv2d.1} parent=5 // pred_check_branch
      %554 = sbr.rel (%p552) target = $region44
    $region43: #{complex_conv2d.1} parent=5 // pred_region
      %s555 = ssub.s32 %s10, 2
      // Predicated region
      $region45: #{complex_conv2d.1} parent=43 // pred_check
        %p556 = pneg %p155
      $region46: #{complex_conv2d.1} parent=43 // pred_check_branch
        %558 = sbr.rel (%p556) target = $region48
      $region47: #{complex_conv2d.1} parent=43 // pred_region
        %s559 = smul.u32 3, %s22
        %p560 = scmp.lt.s32.totalorder %s21, 1
        %s561 = scalar_select %p560, %s21, 1
        %p562 = scmp.lt.s32.totalorder %s559, 2
        %s563 = scalar_select %p562, %s559, 2
        %s564 = smul.addr %s561, 6
        %s565 = sadd.s32 %s563, %s564
        %s566 = smul.addr %s565, 8
        %s567 = scalar_lea.vmem %s4, %s566
      $region48: #{complex_conv2d.1} parent=43 // pred_fallthru
        _
    $region44: #{complex_conv2d.1} parent=5 // pred_fallthru
      _
  $region6: #{complex_conv2d.1} parent=0 // loop_footer
    %s14 = sadd.s32 1, %s10
  $region7: #{complex_conv2d.1} parent=0 // loop_footer_branch
    %9 = sbr.rel target = $region3
  $region8: #{complex_conv2d.1} parent=0 // loop_exit
    _

</llo_original>
